<compile_context>
chip_gen: v7x
topology: tpu7x:2x2x1
jax: 0.10.0
libtpu: 0.0.40
codegen_flags: <defaults>
</compile_context>

<pallas_src>
import functools
import math

import jax
import jax.numpy as jnp
from jax.experimental import pallas as pl
from jax.experimental.pallas import tpu as pltpu


# ----------------------------- helpers ---------------------------------------


def _vmem_limit_bytes():
    # Leave >=16 MiB headroom under physical VMEM for Mosaic internal scratch
    # and register spills (critical on v7x: 64 MiB physical). Cap at 100 MiB
    # so v5e/v6e (128 MiB physical) still get a raised scoped limit.
    try:
        cap = int(pltpu.get_tpu_info().vmem_capacity_bytes)
    except Exception:
        cap = 64 * 1024 * 1024
    return int(min(cap - 16 * 1024 * 1024, 100 * 1024 * 1024))


def _layernorm(x, gamma, beta, eps):
    # torch.nn.LayerNorm over last dim (biased variance), f32.
    mean = jnp.mean(x, axis=-1, keepdims=True)
    var = jnp.mean((x - mean) ** 2, axis=-1, keepdims=True)
    return (x - mean) * jax.lax.rsqrt(var + eps) * gamma + beta


def _gelu(x):
    # BERT's exact gelu (torch semantics): x * 0.5 * (1 + erf(x / sqrt(2)))
    return x * 0.5 * (1.0 + jax.lax.erf(x / math.sqrt(2.0)))


def _pick_tile(n, preferred):
    """Largest preferred tile dividing n; fallbacks stay sublane-aligned
    (multiples of 8) or return n itself, so the (8,128) block constraint is
    always satisfied by construction."""
    for c in preferred:
        if n % c == 0:
            return c
    for c in (64, 32, 16, 8):
        if n % c == 0 and c < n:
            return c
    return n


def _vmem_resident_spec():
    # Grid-constant operand (weights / biases / LN params): whole array kept
    # resident in VMEM, single-buffered.  A second pipeline buffer for an
    # operand fetched exactly once is pure VMEM waste.
    return pl.BlockSpec(memory_space=pltpu.MemorySpace.VMEM)


# ----------------------------- kernels ---------------------------------------


def _qkv_kernel(x_ref, wq_ref, bq_ref, wk_ref, bk_ref, wv_ref, bv_ref,
                q_ref, k_ref, v_ref, *, inv_sqrt_dh):
    x = x_ref[...].astype(jnp.bfloat16)          # (TM, H) bf16 -> MXU
    q = jnp.dot(x, wq_ref[...], preferred_element_type=jnp.float32) + bq_ref[...]
    # Fold the 1/sqrt(dh) attention scale into q (scales the small (TM,H)
    # tile instead of the much larger (nh,TQ,S) score tensor later).
    q_ref[...] = (q * inv_sqrt_dh).astype(q_ref.dtype)
    k_ref[...] = (jnp.dot(x, wk_ref[...], preferred_element_type=jnp.float32)
                  + bk_ref[...]).astype(k_ref.dtype)
    v_ref[...] = (jnp.dot(x, wv_ref[...], preferred_element_type=jnp.float32)
                  + bv_ref[...]).astype(v_ref.dtype)


def _attn_kernel(q_ref, k_ref, v_ref, x_ref, m_ref,
                 wao_ref, bao_ref, g1_ref, be1_ref, o_ref,
                 *, num_heads, eps):
    q = q_ref[0]          # (nh, TQ, dh) bf16, pre-scaled by 1/sqrt(dh)
    k = k_ref[0]          # (nh, S,  dh) bf16
    v = v_ref[0]          # (nh, S,  dh) bf16
    mask = m_ref[0]       # (1, S) f32 additive mask

    # Batched per-head contraction on the MXU (head axis = batch dim).
    s = jnp.einsum("hqd,hkd->hqk", q, k, preferred_element_type=jnp.float32)
    s = s + mask
    s = s - jnp.max(s, axis=-1, keepdims=True)
    p = jnp.exp(s)
    denom = jnp.sum(p, axis=-1, keepdims=True)
    p = p * pl.reciprocal(denom, approx=True)    # EUP slot instead of VALU divide
    # TODO(synk): attention_probs dropout is identity (eval mode / prob=0)

    ctx = jnp.einsum("hqk,hkd->hqd", p.astype(jnp.bfloat16), v,
                     preferred_element_type=jnp.float32)     # (nh, TQ, dh) f32

    # Concatenate heads along the lane dim and run ONE full-depth (K = H)
    # matmul against wao.  Replaces the old per-head small-K matmul loop and
    # its serial read-modify-write of a VMEM-resident f32 accumulator.
    ctx_cat = jnp.concatenate(
        [ctx[h].astype(jnp.bfloat16) for h in range(num_heads)], axis=-1)
    attn = (jnp.dot(ctx_cat, wao_ref[...], preferred_element_type=jnp.float32)
            + bao_ref[...])
    # TODO(synk): hidden dropout is identity (eval mode / prob=0)

    h1 = _layernorm(attn + x_ref[0], g1_ref[...], be1_ref[...], eps)
    o_ref[0] = h1.astype(o_ref.dtype)            # stored bf16


def _ffn_kernel(h_ref, wi_ref, bi_ref, wo_ref, bo_ref, g2_ref, be2_ref, o_ref,
                *, eps):
    h1_bf = h_ref[...]                            # (TM, H) bf16 activations
    h1 = h1_bf.astype(jnp.float32)                # f32 for residual / LN
    inter = jnp.dot(h1_bf, wi_ref[...],
                    preferred_element_type=jnp.float32) + bi_ref[...]
    inter = _gelu(inter)
    out = jnp.dot(inter.astype(jnp.bfloat16), wo_ref[...],
                  preferred_element_type=jnp.float32) + bo_ref[...]
    o_ref[...] = _layernorm(out + h1, g2_ref[...], be2_ref[...], eps)


# ----------------------------- wrappers ---------------------------------------


def bert_layer_forward(x, mask3, params, *, num_heads, eps):
    """x: (B, S, H) f32, mask3: (B, 1, S) additive mask, params: dict."""
    B, S, H = x.shape
    I = params["wi"].shape[1]
    assert H % num_heads == 0, "hidden size must be a multiple of num_heads"
    dh = H // num_heads
    BS = B * S

    tm = _pick_tile(BS, (256, 128))   # row tile for QKV / FFN matmuls
    tq = _pick_tile(S, (128, 256))    # 128 keeps the live (nh,tq,S) f32 score
                                      # tensor small (important on v7x)
    assert BS % tm == 0 and S % tq == 0

    bf16 = jnp.bfloat16
    # MXU-facing weights in bf16 (halves weight DMA, bf16-native MXU).
    wq = params["wq"].astype(bf16)
    wk = params["wk"].astype(bf16)
    wv = params["wv"].astype(bf16)
    wao = params["wao"].astype(bf16)
    wi = params["wi"].astype(bf16)
    wo = params["wo"].astype(bf16)
    # Biases / LN params stay f32 (added to f32 accumulators).
    bq, bk, bv = params["bq"], params["bk"], params["bv"]
    bao, g1, be1 = params["bao"], params["g1"], params["be1"]
    bi, bo, g2, be2 = params["bi"], params["bo"], params["g2"], params["be2"]

    vmem_limit = _vmem_limit_bytes()
    cp_1d = pltpu.CompilerParams(dimension_semantics=("parallel",),
                                 vmem_limit_bytes=vmem_limit)
    # grid (B, S//tq): both parallel; on v7x the megacore split prefers the
    # leading B axis so each core keeps one batch element's K/V resident.
    cp_2d = pltpu.CompilerParams(dimension_semantics=("parallel", "parallel"),
                                 vmem_limit_bytes=vmem_limit)

    # ---- 1) QKV projection over row tiles of the flattened activations ----
    x2 = x.reshape(BS, H)
    qkv_cost = pl.CostEstimate(
        flops=int(2 * 3 * BS * H * H),
        transcendentals=0,
        bytes_accessed=int(BS * H * 4 + 3 * H * H * 2 + 3 * BS * H * 2),
    )
    q2, k2, v2 = pl.pallas_call(
        functools.partial(_qkv_kernel, inv_sqrt_dh=1.0 / math.sqrt(dh)),
        out_shape=[jax.ShapeDtypeStruct((BS, H), bf16)] * 3,
        grid=(BS // tm,),
        in_specs=[
            pl.BlockSpec((tm, H), lambda i: (i, 0)),
            _vmem_resident_spec(), _vmem_resident_spec(),
            _vmem_resident_spec(), _vmem_resident_spec(),
            _vmem_resident_spec(), _vmem_resident_spec(),
        ],
        out_specs=[pl.BlockSpec((tm, H), lambda i: (i, 0))] * 3,
        compiler_params=cp_1d,
        cost_estimate=qkv_cost,
    )(x2, wq, bq, wk, bk, wv, bv)

    # Head split in the wrapper: (B*S, H) -> (B, nh, S, dh).
    # TODO(synk): this XLA transpose is one bf16 HBM round trip per layer.
    def split_heads(t):
        return t.reshape(B, S, num_heads, dh).transpose(0, 2, 1, 3)

    qh, kh, vh = split_heads(q2), split_heads(k2), split_heads(v2)

    # ---- 2) attention + output projection + residual + LN1 ----
    attn_cost = pl.CostEstimate(
        flops=int(4 * B * num_heads * S * S * dh + 2 * B * S * H * H),
        transcendentals=int(B * num_heads * S * S),
        bytes_accessed=int(B * S * H * 2                    # q
                           + 2 * B * (S // tq) * S * H * 2  # k, v per q-tile
                           + B * S * H * 4                  # residual x
                           + H * H * 2 + 4 * H * 4          # wao + params
                           + B * S * H * 2),                # h1 out (bf16)
    )
    attn_kernel = functools.partial(_attn_kernel, num_heads=num_heads, eps=eps)
    h1 = pl.pallas_call(
        attn_kernel,
        out_shape=jax.ShapeDtypeStruct((B, S, H), bf16),
        grid=(B, S // tq),
        in_specs=[
            pl.BlockSpec((1, num_heads, tq, dh), lambda b, qi: (b, 0, qi, 0)),
            pl.BlockSpec((1, num_heads, S, dh), lambda b, qi: (b, 0, 0, 0)),
            pl.BlockSpec((1, num_heads, S, dh), lambda b, qi: (b, 0, 0, 0)),
            pl.BlockSpec((1, tq, H), lambda b, qi: (b, qi, 0)),   # residual
            pl.BlockSpec((1, 1, S), lambda b, qi: (b, 0, 0)),     # mask
            _vmem_resident_spec(),                                # wao (H, H)
            _vmem_resident_spec(), _vmem_resident_spec(), _vmem_resident_spec(),
        ],
        out_specs=pl.BlockSpec((1, tq, H), lambda b, qi: (b, qi, 0)),
        compiler_params=cp_2d,
        cost_estimate=attn_cost,
    )(qh, kh, vh, x, mask3, wao, bao, g1, be1)

    # ---- 3) FFN + residual + LN2 over row tiles ----
    ffn_cost = pl.CostEstimate(
        flops=int(2 * 2 * BS * H * I),
        transcendentals=int(BS * I),
        bytes_accessed=int(BS * H * 2 + 2 * H * I * 2 + BS * H * 4),
    )
    h1_2 = h1.reshape(BS, H)
    out2 = pl.pallas_call(
        functools.partial(_ffn_kernel, eps=eps),
        out_shape=jax.ShapeDtypeStruct((BS, H), jnp.float32),
        grid=(BS // tm,),
        in_specs=[
            pl.BlockSpec((tm, H), lambda i: (i, 0)),
            _vmem_resident_spec(), _vmem_resident_spec(),
            _vmem_resident_spec(), _vmem_resident_spec(),
            _vmem_resident_spec(), _vmem_resident_spec(),
        ],
        out_specs=pl.BlockSpec((tm, H), lambda i: (i, 0)),
        compiler_params=cp_1d,
        cost_estimate=ffn_cost,
    )(h1_2, wi, bi, wo, bo, g2, be2)

    return out2.reshape(B, S, H)


def bert_encoder_forward(x, mask4, layer_params, *, num_heads, eps,
                         output_all_encoded_layers=True):
    """Mirrors BertEncoder.forward.  mask4: (B, 1, 1, S) additive mask."""
    B, _, _, S = mask4.shape
    mask3 = mask4.reshape(B, 1, S)
    all_layers = []
    h = x
    for p in layer_params:
        h = bert_layer_forward(h, mask3, p, num_heads=num_heads, eps=eps)
        if output_all_encoded_layers:
            all_layers.append(h)
    if not output_all_encoded_layers:
        all_layers.append(h)
    return all_layers


# ----------------------------- reference (pure JAX, f32) ----------------------


def _ref_layer(x, mask4, p, num_heads, eps):
    B, S, H = x.shape
    dh = H // num_heads

    def split(t):
        return t.reshape(B, S, num_heads, dh).transpose(0, 2, 1, 3)

    q = x @ p["wq"] + p["bq"][0]
    k = x @ p["wk"] + p["bk"][0]
    v = x @ p["wv"] + p["bv"][0]
    qh, kh, vh = split(q), split(k), split(v)
    scores = jnp.einsum("bhqd,bhkd->bhqk", qh, kh) / math.sqrt(dh) + mask4
    probs = jax.nn.softmax(scores, axis=-1)
    ctx = jnp.einsum("bhqk,bhkd->bhqd", probs, vh).transpose(0, 2, 1, 3).reshape(B, S, H)

    def ln(t, g, b):
        mean = jnp.mean(t, axis=-1, keepdims=True)
        var = jnp.mean((t - mean) ** 2, axis=-1, keepdims=True)
        return (t - mean) * jax.lax.rsqrt(var + eps) * g + b

    attn = ctx @ p["wao"] + p["bao"][0]
    h1 = ln(attn + x, p["g1"][0], p["be1"][0])
    inter = h1 @ p["wi"] + p["bi"][0]
    inter = inter * 0.5 * (1.0 + jax.lax.erf(inter / math.sqrt(2.0)))
    out = inter @ p["wo"] + p["bo"][0]
    return ln(out + h1, p["g2"][0], p["be2"][0])


def _ref_encoder(x, mask4, layer_params, num_heads, eps):
    outs = []
    h = x
    for p in layer_params:
        h = _ref_layer(h, mask4, p, num_heads, eps)
        outs.append(h)
    return outs


# ----------------------------- main -------------------------------------------


def _init_layer_params(key, H, I):
    ks = jax.random.split(key, 6)
    std = 0.02
    return {
        "wq": jax.random.normal(ks[0], (H, H), jnp.float32) * std,
        "bq": jnp.zeros((1, H), jnp.float32),
        "wk": jax.random.normal(ks[1], (H, H), jnp.float32) * std,
        "bk": jnp.zeros((1, H), jnp.float32),
        "wv": jax.random.normal(ks[2], (H, H), jnp.float32) * std,
        "bv": jnp.zeros((1, H), jnp.float32),
        "wao": jax.random.normal(ks[3], (H, H), jnp.float32) * std,
        "bao": jnp.zeros((1, H), jnp.float32),
        "g1": jnp.ones((1, H), jnp.float32),
        "be1": jnp.zeros((1, H), jnp.float32),
        "wi": jax.random.normal(ks[4], (H, I), jnp.float32) * std,
        "bi": jnp.zeros((1, I), jnp.float32),
        "wo": jax.random.normal(ks[5], (I, H), jnp.float32) * std,
        "bo": jnp.zeros((1, H), jnp.float32),
        "g2": jnp.ones((1, H), jnp.float32),
        "be2": jnp.zeros((1, H), jnp.float32),
    }


if __name__ == "__main__":
    # Small BERT config: 2 layers, hidden 32, 4 heads, intermediate 64.
    # (Toy dims are far below one vreg / 128 lanes -- benchmark only at real
    #  BERT sizes; this config is for correctness.)
    B, S, H = 2, 8, 32
    num_heads, I, num_layers = 4, 64, 2
    eps = 1e-12

    key = jax.random.PRNGKey(0)
    k_x, k_params = jax.random.split(key)
    x = jax.random.normal(k_x, (B, S, H), jnp.float32)

    # Additive attention mask, torch-style (B, 1, 1, S): mask out last 2 keys
    # of the second batch element.
    mask4 = jnp.zeros((B, 1, 1, S), jnp.float32)
    mask4 = mask4.at[1, :, :, S - 2:].set(-10000.0)

    layer_keys = jax.random.split(k_params, num_layers)
    layer_params = [_init_layer_params(layer_keys[i], H, I) for i in range(num_layers)]

    outs = bert_encoder_forward(
        x, mask4, layer_params, num_heads=num_heads, eps=eps,
        output_all_encoded_layers=True,
    )
    outs = [jax.block_until_ready(o) for o in outs]

    # Correctness check against a pure-JAX f32 reference of the torch
    # semantics.  Tolerance loosened vs the f32 kernel because matmul operands
    # and the inter-kernel h1 activation are bf16 and the softmax uses the
    # approximate reciprocal.
    refs = _ref_encoder(x, mask4, layer_params, num_heads, eps)
    for o, r in zip(outs, refs):
        assert o.shape == (B, S, H)
        assert jnp.allclose(o, r, rtol=5e-2, atol=5e-2), "mismatch vs reference"

    print("KERNEL_OK")
</pallas_src>

<mosaic_0001>
module attributes {stable_mosaic.version = 11 : i64} {
  func.func @_qkv_kernel(%arg0: i32, %arg1: memref<8x32xf32, #tpu.memory_space<vmem>>, %arg2: memref<32x32xbf16, #tpu.memory_space<vmem>>, %arg3: memref<1x32xf32, #tpu.memory_space<vmem>>, %arg4: memref<32x32xbf16, #tpu.memory_space<vmem>>, %arg5: memref<1x32xf32, #tpu.memory_space<vmem>>, %arg6: memref<32x32xbf16, #tpu.memory_space<vmem>>, %arg7: memref<1x32xf32, #tpu.memory_space<vmem>>, %arg8: memref<8x32xbf16, #tpu.memory_space<vmem>>, %arg9: memref<8x32xbf16, #tpu.memory_space<vmem>>, %arg10: memref<8x32xbf16, #tpu.memory_space<vmem>>) attributes {dimension_semantics = [#tpu.dimension_semantics<parallel>], iteration_bounds = array<i64: 2>, scalar_prefetch = 0 : i64, scratch_operands = 0 : i64, tpu.core_type = #tpu.core_type<tc>, window_params = [{transform_indices = @transform_0, window_bounds = array<i64: 8, 32>}, {pipeline_mode = #tpu.pipeline_mode<synchronous>, transform_indices = @transform_1, window_bounds = array<i64: 32, 32>}, {pipeline_mode = #tpu.pipeline_mode<synchronous>, transform_indices = @transform_2, window_bounds = array<i64: 1, 32>}, {pipeline_mode = #tpu.pipeline_mode<synchronous>, transform_indices = @transform_3, window_bounds = array<i64: 32, 32>}, {pipeline_mode = #tpu.pipeline_mode<synchronous>, transform_indices = @transform_4, window_bounds = array<i64: 1, 32>}, {pipeline_mode = #tpu.pipeline_mode<synchronous>, transform_indices = @transform_5, window_bounds = array<i64: 32, 32>}, {pipeline_mode = #tpu.pipeline_mode<synchronous>, transform_indices = @transform_6, window_bounds = array<i64: 1, 32>}, {transform_indices = @transform_7, window_bounds = array<i64: 8, 32>}, {transform_indices = @transform_8, window_bounds = array<i64: 8, 32>}, {transform_indices = @transform_9, window_bounds = array<i64: 8, 32>}]} {
    %c0 = arith.constant 0 : index
    %c0_0 = arith.constant 0 : index
    %0 = vector.load %arg1[%c0, %c0_0] : memref<8x32xf32, #tpu.memory_space<vmem>>, vector<8x32xf32>
    %1 = arith.truncf %0 : vector<8x32xf32> to vector<8x32xbf16>
    %c0_1 = arith.constant 0 : index
    %c0_2 = arith.constant 0 : index
    %2 = vector.load %arg2[%c0_1, %c0_2] : memref<32x32xbf16, #tpu.memory_space<vmem>>, vector<32x32xbf16>
    %cst = arith.constant dense<0.000000e+00> : vector<8x32xf32>
    %3 = tpu.matmul %1, %2, %cst {dimension_numbers = #tpu.dot_dimension_numbers<[1], [0], [0], [1], [0, 0, 1, 1], [], []>} : vector<8x32xbf16>, vector<32x32xbf16>, vector<8x32xf32> -> vector<8x32xf32>
    %c0_3 = arith.constant 0 : index
    %c0_4 = arith.constant 0 : index
    %4 = vector.load %arg3[%c0_3, %c0_4] : memref<1x32xf32, #tpu.memory_space<vmem>>, vector<1x32xf32>
    %5 = vector.broadcast %4 : vector<1x32xf32> to vector<8x32xf32>
    %6 = arith.addf %3, %5 : vector<8x32xf32>
    %cst_5 = arith.constant 0.353553385 : f32
    %7 = vector.broadcast %cst_5 : f32 to vector<8x32xf32>
    %8 = arith.mulf %6, %7 : vector<8x32xf32>
    %9 = arith.truncf %8 : vector<8x32xf32> to vector<8x32xbf16>
    %c0_6 = arith.constant 0 : index
    %c0_7 = arith.constant 0 : index
    %10 = vector.load %arg8[%c0_6, %c0_7] : memref<8x32xbf16, #tpu.memory_space<vmem>>, vector<8x32xbf16>
    tpu.vector_store %arg8[%c0_6, %c0_7], %9 {strides = array<i32>} : memref<8x32xbf16, #tpu.memory_space<vmem>>, vector<8x32xbf16>,
    %c0_8 = arith.constant 0 : index
    %c0_9 = arith.constant 0 : index
    %11 = vector.load %arg4[%c0_8, %c0_9] : memref<32x32xbf16, #tpu.memory_space<vmem>>, vector<32x32xbf16>
    %cst_10 = arith.constant dense<0.000000e+00> : vector<8x32xf32>
    %12 = tpu.matmul %1, %11, %cst_10 {dimension_numbers = #tpu.dot_dimension_numbers<[1], [0], [0], [1], [0, 0, 1, 1], [], []>} : vector<8x32xbf16>, vector<32x32xbf16>, vector<8x32xf32> -> vector<8x32xf32>
    %c0_11 = arith.constant 0 : index
    %c0_12 = arith.constant 0 : index
    %13 = vector.load %arg5[%c0_11, %c0_12] : memref<1x32xf32, #tpu.memory_space<vmem>>, vector<1x32xf32>
    %14 = vector.broadcast %13 : vector<1x32xf32> to vector<8x32xf32>
    %15 = arith.addf %12, %14 : vector<8x32xf32>
    %16 = arith.truncf %15 : vector<8x32xf32> to vector<8x32xbf16>
    %c0_13 = arith.constant 0 : index
    %c0_14 = arith.constant 0 : index
    %17 = vector.load %arg9[%c0_13, %c0_14] : memref<8x32xbf16, #tpu.memory_space<vmem>>, vector<8x32xbf16>
    tpu.vector_store %arg9[%c0_13, %c0_14], %16 {strides = array<i32>} : memref<8x32xbf16, #tpu.memory_space<vmem>>, vector<8x32xbf16>,
    %c0_15 = arith.constant 0 : index
    %c0_16 = arith.constant 0 : index
    %18 = vector.load %arg6[%c0_15, %c0_16] : memref<32x32xbf16, #tpu.memory_space<vmem>>, vector<32x32xbf16>
    %cst_17 = arith.constant dense<0.000000e+00> : vector<8x32xf32>
    %19 = tpu.matmul %1, %18, %cst_17 {dimension_numbers = #tpu.dot_dimension_numbers<[1], [0], [0], [1], [0, 0, 1, 1], [], []>} : vector<8x32xbf16>, vector<32x32xbf16>, vector<8x32xf32> -> vector<8x32xf32>
    %c0_18 = arith.constant 0 : index
    %c0_19 = arith.constant 0 : index
    %20 = vector.load %arg7[%c0_18, %c0_19] : memref<1x32xf32, #tpu.memory_space<vmem>>, vector<1x32xf32>
    %21 = vector.broadcast %20 : vector<1x32xf32> to vector<8x32xf32>
    %22 = arith.addf %19, %21 : vector<8x32xf32>
    %23 = arith.truncf %22 : vector<8x32xf32> to vector<8x32xbf16>
    %c0_20 = arith.constant 0 : index
    %c0_21 = arith.constant 0 : index
    %24 = vector.load %arg10[%c0_20, %c0_21] : memref<8x32xbf16, #tpu.memory_space<vmem>>, vector<8x32xbf16>
    tpu.vector_store %arg10[%c0_20, %c0_21], %23 {strides = array<i32>} : memref<8x32xbf16, #tpu.memory_space<vmem>>, vector<8x32xbf16>,
    return
  }
  func.func @transform_0(%arg0: i32) -> (i32, i32) {
    %c0_i32 = arith.constant 0 : i32
    %c0_i32_0 = arith.constant 0 : i32
    return %arg0, %c0_i32 : i32, i32
  }
  func.func @transform_1(%arg0: i32) -> (i32, i32) {
    %c0_i32 = arith.constant 0 : i32
    %c0_i32_0 = arith.constant 0 : i32
    %c0_i32_1 = arith.constant 0 : i32
    return %c0_i32, %c0_i32_0 : i32, i32
  }
  func.func @transform_2(%arg0: i32) -> (i32, i32) {
    %c0_i32 = arith.constant 0 : i32
    %c0_i32_0 = arith.constant 0 : i32
    %c0_i32_1 = arith.constant 0 : i32
    return %c0_i32, %c0_i32_0 : i32, i32
  }
  func.func @transform_3(%arg0: i32) -> (i32, i32) {
    %c0_i32 = arith.constant 0 : i32
    %c0_i32_0 = arith.constant 0 : i32
    %c0_i32_1 = arith.constant 0 : i32
    return %c0_i32, %c0_i32_0 : i32, i32
  }
  func.func @transform_4(%arg0: i32) -> (i32, i32) {
    %c0_i32 = arith.constant 0 : i32
    %c0_i32_0 = arith.constant 0 : i32
    %c0_i32_1 = arith.constant 0 : i32
    return %c0_i32, %c0_i32_0 : i32, i32
  }
  func.func @transform_5(%arg0: i32) -> (i32, i32) {
    %c0_i32 = arith.constant 0 : i32
    %c0_i32_0 = arith.constant 0 : i32
    %c0_i32_1 = arith.constant 0 : i32
    return %c0_i32, %c0_i32_0 : i32, i32
  }
  func.func @transform_6(%arg0: i32) -> (i32, i32) {
    %c0_i32 = arith.constant 0 : i32
    %c0_i32_0 = arith.constant 0 : i32
    %c0_i32_1 = arith.constant 0 : i32
    return %c0_i32, %c0_i32_0 : i32, i32
  }
  func.func @transform_7(%arg0: i32) -> (i32, i32) {
    %c0_i32 = arith.constant 0 : i32
    %c0_i32_0 = arith.constant 0 : i32
    return %arg0, %c0_i32 : i32, i32
  }
  func.func @transform_8(%arg0: i32) -> (i32, i32) {
    %c0_i32 = arith.constant 0 : i32
    %c0_i32_0 = arith.constant 0 : i32
    return %arg0, %c0_i32 : i32, i32
  }
  func.func @transform_9(%arg0: i32) -> (i32, i32) {
    %c0_i32 = arith.constant 0 : i32
    %c0_i32_0 = arith.constant 0 : i32
    return %arg0, %c0_i32 : i32, i32
  }
}

</mosaic_0001>

<llo_original>
// kernel: tpu_custom_call.1
$region0: #{tpu_custom_call.1}
  #allocation0 [shape = 'u32[]', space=smem, size = 0x4, offset = 0x4, fixed_abs, tag = 'smem constant byte address 0x4 - core index']
  #allocation1 [shape = 'u32[144,128]{1,0:T(1,128)}', space=vmem, size = 0x12000, scoped, tag = 'internal scratch']
  %s0 = inlined_call_operand.hbm [shape: f32[16,32], index: 0, kind: input, shape index: {}]
  %s1 = inlined_call_operand.hbm [shape: bf16[32,32], index: 1, kind: input, shape index: {}]
  %s2 = inlined_call_operand.vmem [shape: f32[1,32], index: 2, kind: input, shape index: {}]
  %s3 = inlined_call_operand.hbm [shape: bf16[32,32], index: 3, kind: input, shape index: {}]
  %s4 = inlined_call_operand.vmem [shape: f32[1,32], index: 4, kind: input, shape index: {}]
  %s5 = inlined_call_operand.vmem [shape: bf16[32,32], index: 5, kind: input, shape index: {}]
  %s6 = inlined_call_operand.vmem [shape: f32[1,32], index: 6, kind: input, shape index: {}]
  %s7 = inlined_call_operand.hbm [shape: bf16[16,32], index: 7, kind: output, shape index: {0}]
  %s8 = inlined_call_operand.hbm [shape: bf16[16,32], index: 8, kind: output, shape index: {1}]
  %s9 = inlined_call_operand.hbm [shape: bf16[16,32], index: 9, kind: output, shape index: {2}]
  %10 = xla_tuple %s7, %s8, %s9
  %s11 = sld [smem:[#allocation0]]
  $region89: #{tpu_custom_call.1} parent=0
    _
  %s13 = ssub.s32 1, %s11
  %s14 = scalar_select 0, %s13, %s11
  $region1: #{tpu_custom_call.1} parent=0
    #allocation2 [shape = 'u8[8192]{0}', space=vmem, size = 0x2000, scoped, tag = 'input window, operand 0']
    #allocation3 [shape = 's32[2]{0}', space=sflag, size = 0x8, scoped, tag = 'scoped memory for tpu_custom_call.1']
    #allocation4 [shape = 's32[2]{0}', space=sflag, size = 0x8, scoped, tag = 'scoped memory for tpu_custom_call.1']
    #allocation5 [shape = 'u8[8192]{0}', space=vmem, size = 0x2000, scoped, tag = 'input window, operand 1, single buffered']
    #allocation6 [shape = 's32[1]{0}', space=sflag, size = 0x4, scoped, tag = 'scoped memory for tpu_custom_call.1']
    #allocation7 [shape = 'u8[8192]{0}', space=vmem, size = 0x2000, scoped, tag = 'input window, operand 3, single buffered']
    #allocation8 [shape = 'u8[4096]{0}', space=vmem, size = 0x1000, scoped, tag = 'output window, operand 0']
    #allocation9 [shape = 'u8[4096]{0}', space=vmem, size = 0x1000, scoped, tag = 'output window, operand 1']
    #allocation10 [shape = 's32[2]{0}', space=sflag, size = 0x8, scoped, tag = 'scoped memory for tpu_custom_call.1']
    #allocation11 [shape = 'u8[4096]{0}', space=vmem, size = 0x1000, scoped, tag = 'output window, operand 2']
    %15 = vsyncpa [#allocation3], 0
    %s16 = scalar_lea.sflag [#allocation3], 1
    %17 = vsyncpa %s16, 0
    %18 = vsyncpa [#allocation6], 0
    %19 = vsyncpa [#allocation4], 0
    %s20 = scalar_lea.sflag [#allocation4], 1
    %21 = vsyncpa %s20, 0
    %22 = vsyncpa [#allocation10], 0
    %s23 = scalar_lea.sflag [#allocation10], 1
    %24 = vsyncpa %s23, 0
    loop: start=0, step=1, limit=4
    $region2: #{tpu_custom_call.1} parent=1 // loop_pre_header
      _
    $region3: #{tpu_custom_call.1} parent=1 // loop_header
      %s26 = sphi 0, %s30
      %p27 = scmp.ge.s32.totalorder %s26, 4
      %s36 = sphi 0, %s38
      %s39 = sphi 0, %s36
      %s40 = sphi 0, %s39
      %s56 = sphi 0, %s40
      %s60 = sphi 0, %s60
      %s62 = sphi 0, %s60
      %s63 = sphi 0, %s62
      %s77 = sphi 0, %s63
      %s81 = sphi 0, %s81
      %s83 = sphi 0, %s81
      %s84 = sphi 0, %s83
      %s98 = sphi 0, %s84
      %s102 = sphi 0, %s102
      %s104 = sphi 0, %s102
      %s105 = sphi 0, %s104
      %s119 = sphi 0, %s105
      %s123 = sphi 0, %s123
      %s125 = sphi 0, %s123
      %s126 = sphi 0, %s125
      %s140 = sphi 0, %s126
      %s144 = sphi 0, %s144
      %s146 = sphi 0, %s144
      %s147 = sphi 0, %s146
      %s161 = sphi 0, %s147
      %s165 = sphi 0, %s165
      %s167 = sphi 0, %s165
      %s168 = sphi 0, %s167
      %s182 = sphi 0, %s168
      %s188 = sphi 0, %s190
      %s191 = sphi 0, %s188
      %s192 = sphi 0, %s191
      %s208 = sphi 0, %s192
      %s214 = sphi 0, %s216
      %s217 = sphi 0, %s214
      %s218 = sphi 0, %s217
      %s234 = sphi 0, %s218
      %s240 = sphi 0, %s242
      %s243 = sphi 0, %s240
      %s244 = sphi 0, %s243
      %s260 = sphi 0, %s244
    $region4: #{tpu_custom_call.1} parent=1 // loop_header_branch
      %29 = sbr.rel (%p27) target = $region8
    $region5: #{tpu_custom_call.1} parent=1 // loop_body
      %s31 = ssub.s32 %s26, 1
      %s32 = ssub.s32 %s26, 2
      %s33 = sadd.s32 %s26, 1
      %s34 = ssub.s32 %s26, %s33
      %p35 = scmp.eq.s32.totalorder %s34, 0
      %s37 = sadd.s32 %s36, 1
      %s38 = scalar_select %p35, %s36, %s37
      %p41 = pneg %p35
      %p42 = scmp.eq.s32.totalorder %s26, 1
      %p43 = por %p41, %p42
      %p44 = scmp.ne.s32.totalorder %s36, %s39
      %p45 = scmp.eq.s32.totalorder %s26, 0
      %p46 = por %p44, %p45
      %p47 = scmp.ne.s32.totalorder %s36, %s39
      %p48 = scmp.eq.s32.totalorder %s31, 1
      %p49 = por %p47, %p48
      %p50 = scmp.ne.s32.totalorder %s39, %s40
      %p51 = scmp.eq.s32.totalorder %s31, 0
      %p52 = por %p50, %p51
      %p53 = scmp.ne.s32.totalorder %s39, %s40
      %p54 = scmp.eq.s32.totalorder %s32, 1
      %p55 = por %p53, %p54
      %p57 = scmp.ne.s32.totalorder %s40, %s56
      %p58 = scmp.eq.s32.totalorder %s32, 0
      %p59 = por %p57, %p58
      %s61 = sadd.s32 %s60, 1
      %p64 = scmp.eq.s32.totalorder %s26, 1
      %p65 = scmp.ne.s32.totalorder %s60, %s62
      %p66 = scmp.eq.s32.totalorder %s26, 0
      %p67 = por %p65, %p66
      %p68 = scmp.ne.s32.totalorder %s60, %s62
      %p69 = scmp.eq.s32.totalorder %s31, 1
      %p70 = por %p68, %p69
      %p71 = scmp.ne.s32.totalorder %s62, %s63
      %p72 = scmp.eq.s32.totalorder %s31, 0
      %p73 = por %p71, %p72
      %p74 = scmp.ne.s32.totalorder %s62, %s63
      %p75 = scmp.eq.s32.totalorder %s32, 1
      %p76 = por %p74, %p75
      %p78 = scmp.ne.s32.totalorder %s63, %s77
      %p79 = scmp.eq.s32.totalorder %s32, 0
      %p80 = por %p78, %p79
      %s82 = sadd.s32 %s81, 1
      %p85 = scmp.eq.s32.totalorder %s26, 1
      %p86 = scmp.ne.s32.totalorder %s81, %s83
      %p87 = scmp.eq.s32.totalorder %s26, 0
      %p88 = por %p86, %p87
      %p89 = scmp.ne.s32.totalorder %s81, %s83
      %p90 = scmp.eq.s32.totalorder %s31, 1
      %p91 = por %p89, %p90
      %p92 = scmp.ne.s32.totalorder %s83, %s84
      %p93 = scmp.eq.s32.totalorder %s31, 0
      %p94 = por %p92, %p93
      %p95 = scmp.ne.s32.totalorder %s83, %s84
      %p96 = scmp.eq.s32.totalorder %s32, 1
      %p97 = por %p95, %p96
      %p99 = scmp.ne.s32.totalorder %s84, %s98
      %p100 = scmp.eq.s32.totalorder %s32, 0
      %p101 = por %p99, %p100
      %s103 = sadd.s32 %s102, 1
      %p106 = scmp.eq.s32.totalorder %s26, 1
      %p107 = scmp.ne.s32.totalorder %s102, %s104
      %p108 = scmp.eq.s32.totalorder %s26, 0
      %p109 = por %p107, %p108
      %p110 = scmp.ne.s32.totalorder %s102, %s104
      %p111 = scmp.eq.s32.totalorder %s31, 1
      %p112 = por %p110, %p111
      %p113 = scmp.ne.s32.totalorder %s104, %s105
      %p114 = scmp.eq.s32.totalorder %s31, 0
      %p115 = por %p113, %p114
      %p116 = scmp.ne.s32.totalorder %s104, %s105
      %p117 = scmp.eq.s32.totalorder %s32, 1
      %p118 = por %p116, %p117
      %p120 = scmp.ne.s32.totalorder %s105, %s119
      %p121 = scmp.eq.s32.totalorder %s32, 0
      %p122 = por %p120, %p121
      %s124 = sadd.s32 %s123, 1
      %p127 = scmp.eq.s32.totalorder %s26, 1
      %p128 = scmp.ne.s32.totalorder %s123, %s125
      %p129 = scmp.eq.s32.totalorder %s26, 0
      %p130 = por %p128, %p129
      %p131 = scmp.ne.s32.totalorder %s123, %s125
      %p132 = scmp.eq.s32.totalorder %s31, 1
      %p133 = por %p131, %p132
      %p134 = scmp.ne.s32.totalorder %s125, %s126
      %p135 = scmp.eq.s32.totalorder %s31, 0
      %p136 = por %p134, %p135
      %p137 = scmp.ne.s32.totalorder %s125, %s126
      %p138 = scmp.eq.s32.totalorder %s32, 1
      %p139 = por %p137, %p138
      %p141 = scmp.ne.s32.totalorder %s126, %s140
      %p142 = scmp.eq.s32.totalorder %s32, 0
      %p143 = por %p141, %p142
      %s145 = sadd.s32 %s144, 1
      %p148 = scmp.eq.s32.totalorder %s26, 1
      %p149 = scmp.ne.s32.totalorder %s144, %s146
      %p150 = scmp.eq.s32.totalorder %s26, 0
      %p151 = por %p149, %p150
      %p152 = scmp.ne.s32.totalorder %s144, %s146
      %p153 = scmp.eq.s32.totalorder %s31, 1
      %p154 = por %p152, %p153
      %p155 = scmp.ne.s32.totalorder %s146, %s147
      %p156 = scmp.eq.s32.totalorder %s31, 0
      %p157 = por %p155, %p156
      %p158 = scmp.ne.s32.totalorder %s146, %s147
      %p159 = scmp.eq.s32.totalorder %s32, 1
      %p160 = por %p158, %p159
      %p162 = scmp.ne.s32.totalorder %s147, %s161
      %p163 = scmp.eq.s32.totalorder %s32, 0
      %p164 = por %p162, %p163
      %s166 = sadd.s32 %s165, 1
      %p169 = scmp.eq.s32.totalorder %s26, 1
      %p170 = scmp.ne.s32.totalorder %s165, %s167
      %p171 = scmp.eq.s32.totalorder %s26, 0
      %p172 = por %p170, %p171
      %p173 = scmp.ne.s32.totalorder %s165, %s167
      %p174 = scmp.eq.s32.totalorder %s31, 1
      %p175 = por %p173, %p174
      %p176 = scmp.ne.s32.totalorder %s167, %s168
      %p177 = scmp.eq.s32.totalorder %s31, 0
      %p178 = por %p176, %p177
      %p179 = scmp.ne.s32.totalorder %s167, %s168
      %p180 = scmp.eq.s32.totalorder %s32, 1
      %p181 = por %p179, %p180
      %p183 = scmp.ne.s32.totalorder %s168, %s182
      %p184 = scmp.eq.s32.totalorder %s32, 0
      %p185 = por %p183, %p184
      %s186 = ssub.s32 %s26, %s33
      %p187 = scmp.eq.s32.totalorder %s186, 0
      %s189 = sadd.s32 %s188, 1
      %s190 = scalar_select %p187, %s188, %s189
      %p193 = pneg %p187
      %p194 = scmp.eq.s32.totalorder %s26, 1
      %p195 = por %p193, %p194
      %p196 = scmp.ne.s32.totalorder %s188, %s191
      %p197 = scmp.eq.s32.totalorder %s26, 0
      %p198 = por %p196, %p197
      %p199 = scmp.ne.s32.totalorder %s188, %s191
      %p200 = scmp.eq.s32.totalorder %s31, 1
      %p201 = por %p199, %p200
      %p202 = scmp.ne.s32.totalorder %s191, %s192
      %p203 = scmp.eq.s32.totalorder %s31, 0
      %p204 = por %p202, %p203
      %p205 = scmp.ne.s32.totalorder %s191, %s192
      %p206 = scmp.eq.s32.totalorder %s32, 1
      %p207 = por %p205, %p206
      %p209 = scmp.ne.s32.totalorder %s192, %s208
      %p210 = scmp.eq.s32.totalorder %s32, 0
      %p211 = por %p209, %p210
      %s212 = ssub.s32 %s26, %s33
      %p213 = scmp.eq.s32.totalorder %s212, 0
      %s215 = sadd.s32 %s214, 1
      %s216 = scalar_select %p213, %s214, %s215
      %p219 = pneg %p213
      %p220 = scmp.eq.s32.totalorder %s26, 1
      %p221 = por %p219, %p220
      %p222 = scmp.ne.s32.totalorder %s214, %s217
      %p223 = scmp.eq.s32.totalorder %s26, 0
      %p224 = por %p222, %p223
      %p225 = scmp.ne.s32.totalorder %s214, %s217
      %p226 = scmp.eq.s32.totalorder %s31, 1
      %p227 = por %p225, %p226
      %p228 = scmp.ne.s32.totalorder %s217, %s218
      %p229 = scmp.eq.s32.totalorder %s31, 0
      %p230 = por %p228, %p229
      %p231 = scmp.ne.s32.totalorder %s217, %s218
      %p232 = scmp.eq.s32.totalorder %s32, 1
      %p233 = por %p231, %p232
      %p235 = scmp.ne.s32.totalorder %s218, %s234
      %p236 = scmp.eq.s32.totalorder %s32, 0
      %p237 = por %p235, %p236
      %s238 = ssub.s32 %s26, %s33
      %p239 = scmp.eq.s32.totalorder %s238, 0
      %s241 = sadd.s32 %s240, 1
      %s242 = scalar_select %p239, %s240, %s241
      %p245 = pneg %p239
      %p246 = scmp.eq.s32.totalorder %s26, 1
      %p247 = por %p245, %p246
      %p248 = scmp.ne.s32.totalorder %s240, %s243
      %p249 = scmp.eq.s32.totalorder %s26, 0
      %p250 = por %p248, %p249
      %p251 = scmp.ne.s32.totalorder %s240, %s243
      %p252 = scmp.eq.s32.totalorder %s31, 1
      %p253 = por %p251, %p252
      %p254 = scmp.ne.s32.totalorder %s243, %s244
      %p255 = scmp.eq.s32.totalorder %s31, 0
      %p256 = por %p254, %p255
      %p257 = scmp.ne.s32.totalorder %s243, %s244
      %p258 = scmp.eq.s32.totalorder %s32, 1
      %p259 = por %p257, %p258
      %p261 = scmp.ne.s32.totalorder %s244, %s260
      %p262 = scmp.eq.s32.totalorder %s32, 0
      %p263 = por %p261, %p262
      %p264 = scmp.le.s32.totalorder 1, %s26
      %p265 = scmp.lt.s32.totalorder %s26, 3
      %p266 = pnand %p264, %p265
      %p267 = pneg %p266
      // Predicated region
      $region9: #{tpu_custom_call.1} parent=5 // pred_check
        _
      $region10: #{tpu_custom_call.1} parent=5 // pred_check_branch
        %269 = sbr.rel (%p266) target = $region12
      $region11: #{tpu_custom_call.1} parent=5 // pred_region
        %s270 = ssub.s32 %s26, 1
        // Predicated region
        $region13: #{tpu_custom_call.1} parent=11 // pred_check
          %p271 = pneg %p73
        $region14: #{tpu_custom_call.1} parent=11 // pred_check_branch
          %273 = sbr.rel (%p271) target = $region16
        $region15: #{tpu_custom_call.1} parent=11 // pred_region
          %s275 = ssub.s32 256, 256
          %276 = vsyncadd [#allocation6], %s275
          %s277 = sshll.u32 [#allocation5], 4
          %s278 = int_to_ptr.vmem [resolvable:$true] %s277
          %283 = dma.hbm_to_vmem [thread:$0]  %s1, 256, %s278, [#allocation6], 64, 64, 4
        $region16: #{tpu_custom_call.1} parent=11 // pred_fallthru
          _
        // Predicated region
        $region17: #{tpu_custom_call.1} parent=11 // pred_check
          %p284 = pneg %p94
        $region18: #{tpu_custom_call.1} parent=11 // pred_check_branch
          %286 = sbr.rel (%p284) target = $region20
        $region19: #{tpu_custom_call.1} parent=11 // pred_region
          _
        $region20: #{tpu_custom_call.1} parent=11 // pred_fallthru
          _
        // Predicated region
        $region21: #{tpu_custom_call.1} parent=11 // pred_check
          %p287 = pneg %p115
        $region22: #{tpu_custom_call.1} parent=11 // pred_check_branch
          %289 = sbr.rel (%p287) target = $region24
        $region23: #{tpu_custom_call.1} parent=11 // pred_region
          %s291 = ssub.s32 256, 256
          %292 = vsyncadd [#allocation6], %s291
          %s293 = sshll.u32 [#allocation7], 4
          %s294 = int_to_ptr.vmem [resolvable:$true] %s293
          %299 = dma.hbm_to_vmem [thread:$0]  %s3, 256, %s294, [#allocation6], 64, 64, 4
        $region24: #{tpu_custom_call.1} parent=11 // pred_fallthru
          _
        // Predicated region
        $region25: #{tpu_custom_call.1} parent=11 // pred_check
          %p300 = pneg %p136
        $region26: #{tpu_custom_call.1} parent=11 // pred_check_branch
          %302 = sbr.rel (%p300) target = $region28
        $region27: #{tpu_custom_call.1} parent=11 // pred_region
          _
        $region28: #{tpu_custom_call.1} parent=11 // pred_fallthru
          _
        // Predicated region
        $region29: #{tpu_custom_call.1} parent=11 // pred_check
          %p303 = pneg %p157
        $region30: #{tpu_custom_call.1} parent=11 // pred_check_branch
          %305 = sbr.rel (%p303) target = $region32
        $region31: #{tpu_custom_call.1} parent=11 // pred_region
          _
        $region32: #{tpu_custom_call.1} parent=11 // pred_fallthru
          _
        // Predicated region
        $region33: #{tpu_custom_call.1} parent=11 // pred_check
          %p306 = pneg %p178
        $region34: #{tpu_custom_call.1} parent=11 // pred_check_branch
          %308 = sbr.rel (%p306) target = $region36
        $region35: #{tpu_custom_call.1} parent=11 // pred_region
          _
        $region36: #{tpu_custom_call.1} parent=11 // pred_fallthru
          _
      $region12: #{tpu_custom_call.1} parent=5 // pred_fallthru
        _
      %p309 = scmp.lt.s32.totalorder %s26, 2
      // Predicated region
      $region37: #{tpu_custom_call.1} parent=5 // pred_check
        %p310 = pneg %p309
      $region38: #{tpu_custom_call.1} parent=5 // pred_check_branch
        %312 = sbr.rel (%p310) target = $region40
      $region39: #{tpu_custom_call.1} parent=5 // pred_region
        // Predicated region
        $region41: #{tpu_custom_call.1} parent=39 // pred_check
          %p313 = pneg %p46
        $region42: #{tpu_custom_call.1} parent=39 // pred_check_branch
          %315 = sbr.rel (%p313) target = $region44
        $region43: #{tpu_custom_call.1} parent=39 // pred_region
          %s316 = sand.u32 %s36, 1
          %s317 = scalar_lea.sflag [#allocation3], %s316
          %s318 = sand.u32 %s36, 1
          %s319 = smul.addr %s318, 8
          %s320 = scalar_lea.vmem [#allocation2], %s319
          %s322 = ssub.s32 128, 128
          %323 = vsyncadd %s317, %s322
          %s324 = smul.addr %s26, 128
          %s325 = scalar_lea.hbm %s0, %s324
          %s327 = sshll.u32 %s320, 4
          %s328 = int_to_ptr.vmem [resolvable:$true] %s327
          %330 = dma.hbm_to_vmem [thread:$0]  %s325, 128, %s328, %s317
        $region44: #{tpu_custom_call.1} parent=39 // pred_fallthru
          _
      $region40: #{tpu_custom_call.1} parent=5 // pred_fallthru
        _
      %p331 = scmp.le.s32.totalorder 1, %s26
      %p332 = scmp.lt.s32.totalorder %s26, 3
      %p333 = pnand %p331, %p332
      %p334 = pneg %p333
      // Predicated region
      $region45: #{tpu_custom_call.1} parent=5 // pred_check
        _
      $region46: #{tpu_custom_call.1} parent=5 // pred_check_branch
        %336 = sbr.rel (%p333) target = $region48
      $region47: #{tpu_custom_call.1} parent=5 // pred_region
        %s337 = ssub.s32 %s26, 1
        %s338 = sand.u32 %s39, 1
        %s339 = scalar_lea.sflag [#allocation3], %s338
        %s340 = sand.u32 %s39, 1
        %s341 = smul.addr %s340, 8
        %s342 = scalar_lea.vmem [#allocation2], %s341
        // Predicated region
        $region49: #{tpu_custom_call.1} parent=47 // pred_check
          %p343 = pneg %p52
        $region50: #{tpu_custom_call.1} parent=47 // pred_check_branch
          %345 = sbr.rel (%p343) target = $region52
        $region51: #{tpu_custom_call.1} parent=47 // pred_region
          %346 = dma.done %s339, 128
        $region52: #{tpu_custom_call.1} parent=47 // pred_fallthru
          _
        // Predicated region
        $region53: #{tpu_custom_call.1} parent=47 // pred_check
          %p347 = pneg %p73
        $region54: #{tpu_custom_call.1} parent=47 // pred_check_branch
          %349 = sbr.rel (%p347) target = $region56
        $region55: #{tpu_custom_call.1} parent=47 // pred_region
          %350 = dma.done [#allocation6], 256
        $region56: #{tpu_custom_call.1} parent=47 // pred_fallthru
          _
        // Predicated region
        $region57: #{tpu_custom_call.1} parent=47 // pred_check
          %p351 = pneg %p115
        $region58: #{tpu_custom_call.1} parent=47 // pred_check_branch
          %353 = sbr.rel (%p351) target = $region60
        $region59: #{tpu_custom_call.1} parent=47 // pred_region
          %354 = dma.done [#allocation6], 256
        $region60: #{tpu_custom_call.1} parent=47 // pred_fallthru
          _
        %s355 = sand.u32 %s39, 1
        %s356 = scalar_lea.sflag [#allocation3], %s355
        %s357 = sand.u32 %s39, 1
        %s358 = smul.addr %s357, 8
        %s359 = scalar_lea.vmem [#allocation2], %s358
        %p360 = pneg %p52
        %p361 = pneg %p49
        %p362 = pneg %p73
        %p363 = pneg %p70
        %p364 = pneg %p94
        %p365 = pneg %p91
        %p366 = pneg %p115
        %p367 = pneg %p112
        %p368 = pneg %p136
        %p369 = pneg %p133
        %p370 = pneg %p157
        %p371 = pneg %p154
        %p372 = pneg %p178
        %p373 = pneg %p175
        %p374 = pneg %p204
        %p375 = pneg %p201
        %s376 = sand.u32 %s191, 1
        %s377 = scalar_lea.sflag [#allocation4], %s376
        %s378 = sand.u32 %s191, 1
        %s379 = smul.addr %s378, 4
        %s380 = scalar_lea.vmem [#allocation8], %s379
        %p381 = pneg %p230
        %p382 = pneg %p227
        %s383 = sand.u32 %s31, 1
        %s384 = scalar_lea.sflag [#allocation10], %s383
        %s385 = sand.u32 %s217, 1
        %s386 = smul.addr %s385, 4
        %s387 = scalar_lea.vmem [#allocation9], %s386
        %p388 = pneg %p256
        %p389 = pneg %p253
        %s390 = sand.u32 %s31, 1
        %s391 = scalar_lea.sflag [#allocation10], %s390
        %s392 = sand.u32 %s243, 1
        %s393 = smul.addr %s392, 4
        %s394 = scalar_lea.vmem [#allocation11], %s393
        %v396 = vld [vmem:[%s342] sm:$0xff]
        %v397 = vpack.c.bf16 %v396, %v396
        %v398 = vld [vmem:[#allocation5] sm:$0xf]
        %v399 = vld [vmem:[#allocation5 + $0x4] sm:$0xf]
        %v400 = vld [vmem:[#allocation5 + $0x8] sm:$0xf]
        %v401 = vld [vmem:[#allocation5 + $0xc] sm:$0xf]
        %v402 = vld [vmem:[%s2] sm:$0x1]
        %v404 = vlaneseq
        %v405 = vshrl.u32 %v404, 7
        %v406 = vsub.s32 0, %v405
        %v407 = vrot.slane %v402, %v406
        %v413 = vunpack.c.l.b16 %v398
        %v414 = vunpack.c.l.b16 %v399
        %v415 = vunpack.c.l.b16 %v400
        %v416 = vunpack.c.l.b16 %v401
        %v417 = vpack.c.b16 %v414, %v413
        %v418 = vpack.c.b16 %v416, %v415
        %vm421 = vcmask 261120
        %v423 = vsel %vm421, %v397, 0
        %425 = vmatprep.subr.bf16.mxu0 0
        %426 = vmatpush1.bf16.msra.mxu0 %v417
        %427 = vmatprep.subr.bf16.mxu0 0
        %428 = vmatpush1.bf16.msra.mxu0 %v418
        %429 = vmatprep.subr.bf16.mxu0 0
        %430 = vmatpush1.bf16.msra.mxu0 0
        %431 = vmatprep.subr.bf16.mxu0 0
        %432 = vmatpush1.bf16.msra.mxu0 0
        %433 = vmatprep.subr.bf16.mxu0 0
        %434 = vmatpush1.bf16.msra.mxu0 0
        %435 = vmatprep.subr.bf16.mxu0 0
        %436 = vmatpush1.bf16.msra.mxu0 0
        %437 = vmatprep.subr.bf16.mxu0 0
        %438 = vmatpush1.bf16.msra.mxu0 0
        %439 = vmatprep.subr.bf16.mxu0 0
        %440 = vmatpush1.bf16.msra.mxu0 0
        %441 = vmatprep.subr.bf16.mxu0 0
        %442 = vmatpush1.bf16.msra.mxu0 0
        %443 = vmatprep.subr.bf16.mxu0 0
        %444 = vmatpush1.bf16.msra.mxu0 0
        %445 = vmatprep.subr.bf16.mxu0 0
        %446 = vmatpush1.bf16.msra.mxu0 0
        %447 = vmatprep.subr.bf16.mxu0 0
        %448 = vmatpush1.bf16.msra.mxu0 0
        %449 = vmatprep.subr.bf16.mxu0 0
        %450 = vmatpush1.bf16.msra.mxu0 0
        %451 = vmatprep.subr.bf16.mxu0 0
        %452 = vmatpush1.bf16.msra.mxu0 0
        %453 = vmatprep.subr.bf16.mxu0 0
        %454 = vmatpush1.bf16.msra.mxu0 0
        %455 = vmatprep.subr.bf16.mxu0 0
        %456 = vmatpush1.bf16.msra.mxu0 0
        %457 = vmatprep.mubr.bf16.mxu0 0
        %458 = vmatmul.mubr.bf16.gmra.mrb[0].mxu0 %v423
        %v459 = vpop.f32.mrb[0].mxu0
        %v460 = vadd.f32 %v407, %v459
        %v461 = vpop.f32.mrb[0].mxu0
        %v462 = vpop.f32.mrb[0].mxu0
        %v463 = vpop.f32.mrb[0].mxu0
        %464 = vdwg.mxu0
        %v465 = vmul.f32 %v460, 0.35355338
        %v466 = vpack.c.bf16 %v465, %v465
        %vm467 = vcmask 257024
        %468 = vst.msk [vmem:[%s380] sm:$0xf] %vm467, %v466
        %v469 = vld [vmem:[#allocation7] sm:$0xf]
        %v470 = vld [vmem:[#allocation7 + $0x4] sm:$0xf]
        %v471 = vld [vmem:[#allocation7 + $0x8] sm:$0xf]
        %v472 = vld [vmem:[#allocation7 + $0xc] sm:$0xf]
        %v473 = vld [vmem:[%s4] sm:$0x1]
        %v475 = vlaneseq
        %v476 = vshrl.u32 %v475, 7
        %v477 = vsub.s32 0, %v476
        %v478 = vrot.slane %v473, %v477
        %v484 = vunpack.c.l.b16 %v469
        %v485 = vunpack.c.l.b16 %v470
        %v486 = vunpack.c.l.b16 %v471
        %v487 = vunpack.c.l.b16 %v472
        %v488 = vpack.c.b16 %v485, %v484
        %v489 = vpack.c.b16 %v487, %v486
        %492 = vmatprep.subr.bf16.mxu0 0
        %493 = vmatpush1.bf16.msra.mxu0 %v488
        %494 = vmatprep.subr.bf16.mxu0 0
        %495 = vmatpush1.bf16.msra.mxu0 %v489
        %496 = vmatprep.subr.bf16.mxu0 0
        %497 = vmatpush1.bf16.msra.mxu0 0
        %498 = vmatprep.subr.bf16.mxu0 0
        %499 = vmatpush1.bf16.msra.mxu0 0
        %500 = vmatprep.subr.bf16.mxu0 0
        %501 = vmatpush1.bf16.msra.mxu0 0
        %502 = vmatprep.subr.bf16.mxu0 0
        %503 = vmatpush1.bf16.msra.mxu0 0
        %504 = vmatprep.subr.bf16.mxu0 0
        %505 = vmatpush1.bf16.msra.mxu0 0
        %506 = vmatprep.subr.bf16.mxu0 0
        %507 = vmatpush1.bf16.msra.mxu0 0
        %508 = vmatprep.subr.bf16.mxu0 0
        %509 = vmatpush1.bf16.msra.mxu0 0
        %510 = vmatprep.subr.bf16.mxu0 0
        %511 = vmatpush1.bf16.msra.mxu0 0
        %512 = vmatprep.subr.bf16.mxu0 0
        %513 = vmatpush1.bf16.msra.mxu0 0
        %514 = vmatprep.subr.bf16.mxu0 0
        %515 = vmatpush1.bf16.msra.mxu0 0
        %516 = vmatprep.subr.bf16.mxu0 0
        %517 = vmatpush1.bf16.msra.mxu0 0
        %518 = vmatprep.subr.bf16.mxu0 0
        %519 = vmatpush1.bf16.msra.mxu0 0
        %520 = vmatprep.subr.bf16.mxu0 0
        %521 = vmatpush1.bf16.msra.mxu0 0
        %522 = vmatprep.subr.bf16.mxu0 0
        %523 = vmatpush1.bf16.msra.mxu0 0
        %524 = vmatprep.mubr.bf16.mxu0 0
        %525 = vmatmul.mubr.bf16.gmra.mrb[0].mxu0 %v423
        %v526 = vpop.f32.mrb[0].mxu0
        %v527 = vadd.f32 %v478, %v526
        %v528 = vpop.f32.mrb[0].mxu0
        %v529 = vpop.f32.mrb[0].mxu0
        %v530 = vpop.f32.mrb[0].mxu0
        %531 = vdwg.mxu0
        %v532 = vpack.c.bf16 %v527, %v527
        %533 = vst.msk [vmem:[%s387] sm:$0xf] %vm467, %v532
        %v534 = vld [vmem:[%s5] sm:$0xf]
        %v535 = vld [vmem:[%s5 + $0x4] sm:$0xf]
        %v536 = vld [vmem:[%s5 + $0x8] sm:$0xf]
        %v537 = vld [vmem:[%s5 + $0xc] sm:$0xf]
        %v538 = vld [vmem:[%s6] sm:$0x1]
        %v540 = vlaneseq
        %v541 = vshrl.u32 %v540, 7
        %v542 = vsub.s32 0, %v541
        %v543 = vrot.slane %v538, %v542
        %v549 = vunpack.c.l.b16 %v534
        %v550 = vunpack.c.l.b16 %v535
        %v551 = vunpack.c.l.b16 %v536
        %v552 = vunpack.c.l.b16 %v537
        %v553 = vpack.c.b16 %v550, %v549
        %v554 = vpack.c.b16 %v552, %v551
        %557 = vmatprep.subr.bf16.mxu0 0
        %558 = vmatpush1.bf16.msra.mxu0 %v553
        %559 = vmatprep.subr.bf16.mxu0 0
        %560 = vmatpush1.bf16.msra.mxu0 %v554
        %561 = vmatprep.subr.bf16.mxu0 0
        %562 = vmatpush1.bf16.msra.mxu0 0
        %563 = vmatprep.subr.bf16.mxu0 0
        %564 = vmatpush1.bf16.msra.mxu0 0
        %565 = vmatprep.subr.bf16.mxu0 0
        %566 = vmatpush1.bf16.msra.mxu0 0
        %567 = vmatprep.subr.bf16.mxu0 0
        %568 = vmatpush1.bf16.msra.mxu0 0
        %569 = vmatprep.subr.bf16.mxu0 0
        %570 = vmatpush1.bf16.msra.mxu0 0
        %571 = vmatprep.subr.bf16.mxu0 0
        %572 = vmatpush1.bf16.msra.mxu0 0
        %573 = vmatprep.subr.bf16.mxu0 0
        %574 = vmatpush1.bf16.msra.mxu0 0
        %575 = vmatprep.subr.bf16.mxu0 0
        %576 = vmatpush1.bf16.msra.mxu0 0
        %577 = vmatprep.subr.bf16.mxu0 0
        %578 = vmatpush1.bf16.msra.mxu0 0
        %579 = vmatprep.subr.bf16.mxu0 0
        %580 = vmatpush1.bf16.msra.mxu0 0
        %581 = vmatprep.subr.bf16.mxu0 0
        %582 = vmatpush1.bf16.msra.mxu0 0
        %583 = vmatprep.subr.bf16.mxu0 0
        %584 = vmatpush1.bf16.msra.mxu0 0
        %585 = vmatprep.subr.bf16.mxu0 0
        %586 = vmatpush1.bf16.msra.mxu0 0
        %587 = vmatprep.subr.bf16.mxu0 0
        %588 = vmatpush1.bf16.msra.mxu0 0
        %589 = vmatprep.mubr.bf16.mxu0 0
        %590 = vmatmul.mubr.bf16.gmra.mrb[0].mxu0 %v423
        %v591 = vpop.f32.mrb[0].mxu0
        %v592 = vadd.f32 %v543, %v591
        %v593 = vpop.f32.mrb[0].mxu0
        %v594 = vpop.f32.mrb[0].mxu0
        %v595 = vpop.f32.mrb[0].mxu0
        %596 = vdwg.mxu0
        %v597 = vpack.c.bf16 %v592, %v592
        %598 = vst.msk [vmem:[%s394] sm:$0xf] %vm467, %v597
        %s599 = sand.u32 %s191, 1
        %s600 = scalar_lea.sflag [#allocation4], %s599
        %s601 = sand.u32 %s191, 1
        %s602 = smul.addr %s601, 4
        %s603 = scalar_lea.vmem [#allocation8], %s602
        %s604 = sand.u32 %s31, 1
        %s605 = scalar_lea.sflag [#allocation10], %s604
        %s606 = sand.u32 %s217, 1
        %s607 = smul.addr %s606, 4
        %s608 = scalar_lea.vmem [#allocation9], %s607
        %s609 = sand.u32 %s31, 1
        %s610 = scalar_lea.sflag [#allocation10], %s609
        %s611 = sand.u32 %s243, 1
        %s612 = smul.addr %s611, 4
        %s613 = scalar_lea.vmem [#allocation11], %s612
        // Predicated region
        $region61: #{tpu_custom_call.1} parent=47 // pred_check
          %p614 = pneg %p201
        $region62: #{tpu_custom_call.1} parent=47 // pred_check_branch
          %616 = sbr.rel (%p614) target = $region64
        $region63: #{tpu_custom_call.1} parent=47 // pred_region
          %s618 = ssub.s32 64, 64
          %619 = vsyncadd %s600, %s618
          %s620 = smul.addr %s31, 64
          %s621 = scalar_lea.hbm %s7, %s620
          %s623 = sshll.u32 %s603, 4
          %s624 = int_to_ptr.vmem [resolvable:$true] %s623
          %626 = dma.vmem_to_hbm [thread:$0]  %s624, 64, %s621, %s600
        $region64: #{tpu_custom_call.1} parent=47 // pred_fallthru
          _
        // Predicated region
        $region65: #{tpu_custom_call.1} parent=47 // pred_check
          %p627 = pneg %p227
        $region66: #{tpu_custom_call.1} parent=47 // pred_check_branch
          %629 = sbr.rel (%p627) target = $region68
        $region67: #{tpu_custom_call.1} parent=47 // pred_region
          %s631 = ssub.s32 64, 64
          %632 = vsyncadd %s605, %s631
          %s633 = smul.addr %s31, 64
          %s634 = scalar_lea.hbm %s8, %s633
          %s636 = sshll.u32 %s608, 4
          %s637 = int_to_ptr.vmem [resolvable:$true] %s636
          %639 = dma.vmem_to_hbm [thread:$0]  %s637, 64, %s634, %s605
        $region68: #{tpu_custom_call.1} parent=47 // pred_fallthru
          _
        // Predicated region
        $region69: #{tpu_custom_call.1} parent=47 // pred_check
          %p640 = pneg %p253
        $region70: #{tpu_custom_call.1} parent=47 // pred_check_branch
          %642 = sbr.rel (%p640) target = $region72
        $region71: #{tpu_custom_call.1} parent=47 // pred_region
          %s644 = ssub.s32 64, 64
          %645 = vsyncadd %s610, %s644
          %s646 = smul.addr %s31, 64
          %s647 = scalar_lea.hbm %s9, %s646
          %s649 = sshll.u32 %s613, 4
          %s650 = int_to_ptr.vmem [resolvable:$true] %s649
          %652 = dma.vmem_to_hbm [thread:$0]  %s650, 64, %s647, %s610
        $region72: #{tpu_custom_call.1} parent=47 // pred_fallthru
          _
      $region48: #{tpu_custom_call.1} parent=5 // pred_fallthru
        _
      %p653 = scmp.le.s32.totalorder 2, %s26
      // Predicated region
      $region73: #{tpu_custom_call.1} parent=5 // pred_check
        %p654 = pneg %p653
      $region74: #{tpu_custom_call.1} parent=5 // pred_check_branch
        %656 = sbr.rel (%p654) target = $region76
      $region75: #{tpu_custom_call.1} parent=5 // pred_region
        %s657 = ssub.s32 %s26, 2
        // Predicated region
        $region77: #{tpu_custom_call.1} parent=75 // pred_check
          %p658 = pneg %p207
        $region78: #{tpu_custom_call.1} parent=75 // pred_check_branch
          %660 = sbr.rel (%p658) target = $region80
        $region79: #{tpu_custom_call.1} parent=75 // pred_region
          %s661 = sand.u32 %s192, 1
          %s662 = scalar_lea.sflag [#allocation4], %s661
          %s663 = sand.u32 %s192, 1
          %s664 = smul.addr %s663, 4
          %s665 = scalar_lea.vmem [#allocation8], %s664
          %666 = dma.done %s662, 64
        $region80: #{tpu_custom_call.1} parent=75 // pred_fallthru
          _
        // Predicated region
        $region81: #{tpu_custom_call.1} parent=75 // pred_check
          %p667 = pneg %p233
        $region82: #{tpu_custom_call.1} parent=75 // pred_check_branch
          %669 = sbr.rel (%p667) target = $region84
        $region83: #{tpu_custom_call.1} parent=75 // pred_region
          %s670 = sand.u32 %s32, 1
          %s671 = scalar_lea.sflag [#allocation10], %s670
          %s672 = sand.u32 %s218, 1
          %s673 = smul.addr %s672, 4
          %s674 = scalar_lea.vmem [#allocation9], %s673
          %675 = dma.done %s671, 64
        $region84: #{tpu_custom_call.1} parent=75 // pred_fallthru
          _
        // Predicated region
        $region85: #{tpu_custom_call.1} parent=75 // pred_check
          %p676 = pneg %p259
        $region86: #{tpu_custom_call.1} parent=75 // pred_check_branch
          %678 = sbr.rel (%p676) target = $region88
        $region87: #{tpu_custom_call.1} parent=75 // pred_region
          %s679 = sand.u32 %s32, 1
          %s680 = scalar_lea.sflag [#allocation10], %s679
          %s681 = sand.u32 %s244, 1
          %s682 = smul.addr %s681, 4
          %s683 = scalar_lea.vmem [#allocation11], %s682
          %684 = dma.done %s680, 64
        $region88: #{tpu_custom_call.1} parent=75 // pred_fallthru
          _
      $region76: #{tpu_custom_call.1} parent=5 // pred_fallthru
        _
    $region6: #{tpu_custom_call.1} parent=1 // loop_footer
      %s30 = sadd.s32 1, %s26
    $region7: #{tpu_custom_call.1} parent=1 // loop_footer_branch
      %25 = sbr.rel target = $region3
    $region8: #{tpu_custom_call.1} parent=1 // loop_exit
      _
    %685 = vsyncpa [#allocation3], 1
    %s686 = scalar_lea.sflag [#allocation3], 1
    %687 = vsyncpa %s686, 1
    %688 = vsyncpa [#allocation6], 1
    %689 = vsyncpa [#allocation4], 1
    %s690 = scalar_lea.sflag [#allocation4], 1
    %691 = vsyncpa %s690, 1
    %692 = vsyncpa [#allocation10], 1
    %s693 = scalar_lea.sflag [#allocation10], 1
    %694 = vsyncpa %s693, 1

</llo_original>
